<compile_context>
chip_gen: v7x
topology: tpu7x:2x2x1
jax: 0.10.0
libtpu: 0.0.40
codegen_flags: <defaults>
</compile_context>

<pallas_src>
import jax
import jax.numpy as jnp
from jax.experimental import pallas as pl
from jax.experimental.pallas import tpu as pltpu

_LANE = 512              # lane-dense tile width (multiple of 128)
_MAX_BLOCK_ROWS = 2048   # up to (2048, 512) f32 = 4 MiB per input block


def _round_up(v, m):
    return (v + m - 1) // m * m


def _cdiv(a, b):
    return -(-a // b)


def _num_core_split():
    # 2-way "parallel" split only on dual-TensorCore chips (v7x);
    # on single-TC v5e/v6e the split is pure overhead.
    try:
        kind = jax.devices()[0].device_kind.lower()
    except Exception:
        return 1
    return 2 if "v7" in kind else 1


def elbo_loss(reconstruction, x, mu, log_var):
    """Pallas implementation of ELBOLoss.forward. Returns a scalar float32."""
    n = reconstruction.size
    assert x.size == n, "reconstruction and x must have the same number of elements"

    # --- lane-dense (rows, _LANE) view; pad (with r=1, x=1 -> exactly zero BCE term)
    # only the sub-512 remainder, never whole blocks. ---
    lane_rem = n % _LANE
    if lane_rem:
        pad = _LANE - lane_rem
        recon_flat = jnp.concatenate(
            [reconstruction.reshape(-1), jnp.ones((pad,), reconstruction.dtype)])
        x_flat = jnp.concatenate([x.reshape(-1), jnp.ones((pad,), x.dtype)])
    else:
        pad = 0
        recon_flat = reconstruction.reshape(-1)
        x_flat = x.reshape(-1)
    rows = (n + pad) // _LANE
    recon2d = recon_flat.reshape(rows, _LANE)
    x2d = x_flat.reshape(rows, _LANE)

    mu2d = mu.reshape(1, -1)
    lv2d = log_var.reshape(1, -1)

    nsplit = _num_core_split()
    block_rows = min(_MAX_BLOCK_ROWS, _round_up(_cdiv(rows, nsplit), 8))
    nblocks = _cdiv(rows, block_rows)
    nblocks_pad = _round_up(nblocks, nsplit)
    steps = nblocks_pad // nsplit
    needs_mask = nblocks_pad * block_rows > rows       # ragged / dead rows exist
    has_dead_blocks = nblocks_pad > nblocks            # whole dead block (nsplit>1 only)

    if has_dead_blocks:
        # Dead blocks re-read the last real block (fully masked in-kernel anyway).
        def data_map(c, i):
            return (jnp.minimum(c * steps + i, nblocks - 1), 0)
    else:
        def data_map(c, i):
            return (c * steps + i, 0)

    def kernel(recon_ref, x_ref, mu_ref, lv_ref, out_ref, acc_ref):
        c = pl.program_id(0)            # core-split index
        i = pl.program_id(1)            # streaming step

        @pl.when(i == 0)
        def _init():
            acc_ref[...] = jnp.zeros_like(acc_ref)

        # --- reconstruction term (BCE with reduction='sum') ---
        r = recon_ref[...].astype(jnp.float32)
        xv = x_ref[...].astype(jnp.float32)
        # PyTorch BCELoss clamps each log output at -100.
        log_r = jnp.maximum(jnp.log(r), -100.0)
        log_1mr = jnp.maximum(jnp.log(1.0 - r), -100.0)
        # == x*log_r + (1-x)*log_1mr, with 2 fewer VALU ops per element.
        term = log_1mr + xv * (log_r - log_1mr)

        if needs_mask:
            # Zero out rows past the real data (clipped-block garbage / dead blocks).
            blk = c * steps + i
            row_id = jax.lax.broadcasted_iota(jnp.int32, (block_rows, _LANE), 0)
            term = jnp.where(row_id < rows - blk * block_rows, term, 0.0)

        # Reduce the block into the small (8, _LANE) accumulator with vreg adds only
        # (layout-preserving reshape, no cross-lane work here).
        acc_ref[...] += jnp.sum(term.reshape(block_rows // 8, 8, _LANE), axis=0)

        # --- epilogue: single small reduce + KL term, once per core ---
        @pl.when(i == pl.num_programs(1) - 1)
        def _finalize():
            bce = -jnp.sum(acc_ref[...])
            muv = mu_ref[...].astype(jnp.float32)
            lvv = lv_ref[...].astype(jnp.float32)
            kl = 0.5 * jnp.sum(-1.0 - lvv + muv * muv + jnp.exp(lvv))
            total = bce + jnp.where(c == 0, kl, 0.0)   # KL added by core 0 only
            out_ref[...] = jnp.full(out_ref.shape, total, dtype=jnp.float32)

    cost = pl.CostEstimate(
        flops=int(6 * rows * _LANE + 8 * mu.size),
        transcendentals=int(2 * rows * _LANE + mu.size),
        bytes_accessed=int(recon2d.size * recon2d.dtype.itemsize
                           + x2d.size * x2d.dtype.itemsize
                           + mu.size * mu.dtype.itemsize
                           + log_var.size * log_var.dtype.itemsize
                           + nsplit * 8 * 128 * 4),
    )

    out = pl.pallas_call(
        kernel,
        out_shape=jax.ShapeDtypeStruct((nsplit, 8, 128), jnp.float32),
        grid_spec=pltpu.PrefetchScalarGridSpec(
            num_scalar_prefetch=0,
            grid=(nsplit, steps),
            in_specs=[
                pl.BlockSpec((block_rows, _LANE), data_map),
                pl.BlockSpec((block_rows, _LANE), data_map),
                # mu / log_var: tiny, constant block -> DMA'd once, not per step.
                pl.BlockSpec((1, mu2d.shape[1]), lambda c, i: (0, 0)),
                pl.BlockSpec((1, lv2d.shape[1]), lambda c, i: (0, 0)),
            ],
            out_specs=pl.BlockSpec((1, 8, 128), lambda c, i: (c, 0, 0)),
            scratch_shapes=[pltpu.VMEM((8, _LANE), jnp.float32)],
        ),
        compiler_params=pltpu.CompilerParams(
            dimension_semantics=("parallel", "arbitrary"),
            vmem_limit_bytes=32 * 1024 * 1024,
        ),
        cost_estimate=cost,
    )(recon2d, x2d, mu2d, lv2d)

    # Per-core partials (core 0's already includes KL); sum them.
    return jnp.sum(out[:, 0, 0])


def _elbo_ref(reconstruction, x, mu, log_var):
    # Pure-JAX reference for a sanity check.
    r = reconstruction.astype(jnp.float32)
    xx = x.astype(jnp.float32)
    log_r = jnp.maximum(jnp.log(r), -100.0)
    log_1mr = jnp.maximum(jnp.log(1.0 - r), -100.0)
    bce = -jnp.sum(xx * log_r + (1.0 - xx) * log_1mr)
    kl = 0.5 * jnp.sum(-1.0 - log_var + mu ** 2 + jnp.exp(log_var))
    return bce + kl


if __name__ == "__main__":
    key = jax.random.PRNGKey(0)
    k1, k2, k3, k4 = jax.random.split(key, 4)

    B, C, H, W = 2, 4, 16, 16
    LATENT = 32

    # reconstruction must lie in (0, 1) for BCE; targets in [0, 1].
    reconstruction = jax.nn.sigmoid(jax.random.normal(k1, (B, C, H, W), jnp.float32))
    x = jax.random.uniform(k2, (B, C, H, W), jnp.float32)
    mu = jax.random.normal(k3, (B, LATENT), jnp.float32)
    log_var = jax.random.normal(k4, (B, LATENT), jnp.float32) * 0.5

    out = elbo_loss(reconstruction, x, mu, log_var)
    jax.block_until_ready(out)

    ref = _elbo_ref(reconstruction, x, mu, log_var)
    assert jnp.allclose(out, ref, rtol=1e-4, atol=1e-2), (out, ref)

    print("KERNEL_OK")
</pallas_src>

<mosaic_0001>
module attributes {stable_mosaic.version = 11 : i64} {
  func.func @kernel(%arg0: i32, %arg1: i32, %arg2: memref<8x512xf32, #tpu.memory_space<vmem>>, %arg3: memref<8x512xf32, #tpu.memory_space<vmem>>, %arg4: memref<1x64xf32, #tpu.memory_space<vmem>>, %arg5: memref<1x64xf32, #tpu.memory_space<vmem>>, %arg6: memref<1x8x128xf32, #tpu.memory_space<vmem>>, %arg7: memref<8x512xf32, #tpu.memory_space<vmem>>) attributes {dimension_semantics = [#tpu.dimension_semantics<parallel>, #tpu.dimension_semantics<arbitrary>], iteration_bounds = array<i64: 1, 1>, scalar_prefetch = 0 : i64, scratch_operands = 1 : i64, tpu.core_type = #tpu.core_type<tc>, window_params = [{transform_indices = @transform_0, window_bounds = array<i64: 8, 512>}, {transform_indices = @transform_1, window_bounds = array<i64: 8, 512>}, {pipeline_mode = #tpu.pipeline_mode<synchronous>, transform_indices = @transform_2, window_bounds = array<i64: 1, 64>}, {pipeline_mode = #tpu.pipeline_mode<synchronous>, transform_indices = @transform_3, window_bounds = array<i64: 1, 64>}, {transform_indices = @transform_4, window_bounds = array<i64: 1, 8, 128>}]} {
    %c0_i32 = arith.constant 0 : i32
    %0 = arith.cmpi eq, %arg1, %c0_i32 : i32
    %1 = arith.extui %0 : i1 to i32
    %c0_i32_0 = arith.constant 0 : i32
    %2 = arith.cmpi ne, %1, %c0_i32_0 : i32
    scf.if %2 {
      %cst_14 = arith.constant 0.000000e+00 : f32
      %33 = vector.broadcast %cst_14 : f32 to vector<8x512xf32>
      %c0_15 = arith.constant 0 : index
      %c0_16 = arith.constant 0 : index
      %34 = vector.load %arg7[%c0_15, %c0_16] : memref<8x512xf32, #tpu.memory_space<vmem>>, vector<8x512xf32>
      tpu.vector_store %arg7[%c0_15, %c0_16], %33 {strides = array<i32>} : memref<8x512xf32, #tpu.memory_space<vmem>>, vector<8x512xf32>,
    } else {
    }
    %c0 = arith.constant 0 : index
    %c0_1 = arith.constant 0 : index
    %3 = vector.load %arg2[%c0, %c0_1] : memref<8x512xf32, #tpu.memory_space<vmem>>, vector<8x512xf32>
    %c0_2 = arith.constant 0 : index
    %c0_3 = arith.constant 0 : index
    %4 = vector.load %arg3[%c0_2, %c0_3] : memref<8x512xf32, #tpu.memory_space<vmem>>, vector<8x512xf32>
    %5 = math.log %3 : vector<8x512xf32>
    %cst = arith.constant -1.000000e+02 : f32
    %6 = vector.broadcast %cst : f32 to vector<8x512xf32>
    %7 = arith.maximumf %5, %6 : vector<8x512xf32>
    %cst_4 = arith.constant 1.000000e+00 : f32
    %8 = vector.broadcast %cst_4 : f32 to vector<8x512xf32>
    %9 = arith.subf %8, %3 : vector<8x512xf32>
    %10 = math.log %9 : vector<8x512xf32>
    %cst_5 = arith.constant -1.000000e+02 : f32
    %11 = vector.broadcast %cst_5 : f32 to vector<8x512xf32>
    %12 = arith.maximumf %10, %11 : vector<8x512xf32>
    %13 = arith.subf %7, %12 : vector<8x512xf32>
    %14 = arith.mulf %4, %13 : vector<8x512xf32>
    %15 = arith.addf %12, %14 : vector<8x512xf32>
    %c1_i32 = arith.constant 1 : i32
    %16 = arith.muli %arg0, %c1_i32 : i32
    %17 = arith.addi %16, %arg1 : i32
    %18 = tpu.iota {dimensions = array<i32: 0>} : vector<8x512xi32>
    %c8_i32 = arith.constant 8 : i32
    %19 = arith.muli %17, %c8_i32 : i32
    %c4_i32 = arith.constant 4 : i32
    %20 = arith.subi %c4_i32, %19 : i32
    %21 = vector.broadcast %20 : i32 to vector<8x512xi32>
    %22 = arith.cmpi slt, %18, %21 : vector<8x512xi32>
    %cst_6 = arith.constant 0.000000e+00 : f32
    %23 = vector.broadcast %cst_6 : f32 to vector<8x512xf32>
    %24 = arith.select %22, %15, %23 : vector<8x512xi1>, vector<8x512xf32>
    %c0_7 = arith.constant 0 : index
    %c0_8 = arith.constant 0 : index
    %25 = vector.load %arg7[%c0_7, %c0_8] : memref<8x512xf32, #tpu.memory_space<vmem>>, vector<8x512xf32>
    %26 = vector.shape_cast %24 : vector<8x512xf32> to vector<1x8x512xf32>
    %cst_9 = arith.constant dense<0.000000e+00> : vector<8x512xf32>
    %27 = vector.multi_reduction <add>, %26, %cst_9 [0] : vector<1x8x512xf32> to vector<8x512xf32>
    %28 = arith.addf %25, %27 : vector<8x512xf32>
    %c0_10 = arith.constant 0 : index
    %c0_11 = arith.constant 0 : index
    %29 = vector.load %arg7[%c0_10, %c0_11] : memref<8x512xf32, #tpu.memory_space<vmem>>, vector<8x512xf32>
    tpu.vector_store %arg7[%c0_10, %c0_11], %28 {strides = array<i32>} : memref<8x512xf32, #tpu.memory_space<vmem>>, vector<8x512xf32>,
    %c0_i32_12 = arith.constant 0 : i32
    %30 = arith.cmpi eq, %arg1, %c0_i32_12 : i32
    %31 = arith.extui %30 : i1 to i32
    %c0_i32_13 = arith.constant 0 : i32
    %32 = arith.cmpi ne, %31, %c0_i32_13 : i32
    scf.if %32 {
      %c0_14 = arith.constant 0 : index
      %c0_15 = arith.constant 0 : index
      %33 = vector.load %arg7[%c0_14, %c0_15] : memref<8x512xf32, #tpu.memory_space<vmem>>, vector<8x512xf32>
      %34 = vector.shape_cast %33 : vector<8x512xf32> to vector<1x8x512xf32>
      %cst_16 = arith.constant dense<0.000000e+00> : vector<1xf32>
      %35 = vector.multi_reduction <add>, %34, %cst_16 [1, 2] : vector<1x8x512xf32> to vector<1xf32>
      %36 = vector.shape_cast %35 : vector<1xf32> to vector<1x1x1xf32>
      %37 = vector.extract %36[0, 0, 0] : f32 from vector<1x1x1xf32>
      %cst_17 = arith.constant 0.000000e+00 : f32
      %38 = arith.subf %cst_17, %37 : f32
      %c0_18 = arith.constant 0 : index
      %c0_19 = arith.constant 0 : index
      %39 = vector.load %arg4[%c0_18, %c0_19] : memref<1x64xf32, #tpu.memory_space<vmem>>, vector<1x64xf32>
      %c0_20 = arith.constant 0 : index
      %c0_21 = arith.constant 0 : index
      %40 = vector.load %arg5[%c0_20, %c0_21] : memref<1x64xf32, #tpu.memory_space<vmem>>, vector<1x64xf32>
      %cst_22 = arith.constant -1.000000e+00 : f32
      %41 = vector.broadcast %cst_22 : f32 to vector<1x64xf32>
      %42 = arith.subf %41, %40 : vector<1x64xf32>
      %43 = arith.mulf %39, %39 : vector<1x64xf32>
      %44 = arith.addf %42, %43 : vector<1x64xf32>
      %45 = math.exp %40 : vector<1x64xf32>
      %46 = arith.addf %44, %45 : vector<1x64xf32>
      %47 = vector.shape_cast %46 : vector<1x64xf32> to vector<1x1x64xf32>
      %cst_23 = arith.constant dense<0.000000e+00> : vector<1xf32>
      %48 = vector.multi_reduction <add>, %47, %cst_23 [1, 2] : vector<1x1x64xf32> to vector<1xf32>
      %49 = vector.shape_cast %48 : vector<1xf32> to vector<1x1x1xf32>
      %50 = vector.extract %49[0, 0, 0] : f32 from vector<1x1x1xf32>
      %cst_24 = arith.constant 5.000000e-01 : f32
      %51 = arith.mulf %cst_24, %50 : f32
      %c0_i32_25 = arith.constant 0 : i32
      %52 = arith.cmpi eq, %arg0, %c0_i32_25 : i32
      %cst_26 = arith.constant 0.000000e+00 : f32
      %53 = arith.select %52, %51, %cst_26 : f32
      %54 = arith.addf %38, %53 : f32
      %55 = vector.broadcast %54 : f32 to vector<1x8x128xf32>
      %c0_27 = arith.constant 0 : index
      %c0_28 = arith.constant 0 : index
      %c0_29 = arith.constant 0 : index
      %56 = vector.load %arg6[%c0_27, %c0_28, %c0_29] : memref<1x8x128xf32, #tpu.memory_space<vmem>>, vector<1x8x128xf32>
      tpu.vector_store %arg6[%c0_27, %c0_28, %c0_29], %55 {strides = array<i32>} : memref<1x8x128xf32, #tpu.memory_space<vmem>>, vector<1x8x128xf32>,
    } else {
    }
    return
  }
  func.func @transform_0(%arg0: i32, %arg1: i32) -> (i32, i32) {
    %c1_i32 = arith.constant 1 : i32
    %0 = arith.muli %arg0, %c1_i32 : i32
    %1 = arith.addi %0, %arg1 : i32
    %c0_i32 = arith.constant 0 : i32
    %c0_i32_0 = arith.constant 0 : i32
    return %1, %c0_i32 : i32, i32
  }
  func.func @transform_1(%arg0: i32, %arg1: i32) -> (i32, i32) {
    %c1_i32 = arith.constant 1 : i32
    %0 = arith.muli %arg0, %c1_i32 : i32
    %1 = arith.addi %0, %arg1 : i32
    %c0_i32 = arith.constant 0 : i32
    %c0_i32_0 = arith.constant 0 : i32
    return %1, %c0_i32 : i32, i32
  }
  func.func @transform_2(%arg0: i32, %arg1: i32) -> (i32, i32) {
    %c0_i32 = arith.constant 0 : i32
    %c0_i32_0 = arith.constant 0 : i32
    %c0_i32_1 = arith.constant 0 : i32
    return %c0_i32, %c0_i32_0 : i32, i32
  }
  func.func @transform_3(%arg0: i32, %arg1: i32) -> (i32, i32) {
    %c0_i32 = arith.constant 0 : i32
    %c0_i32_0 = arith.constant 0 : i32
    %c0_i32_1 = arith.constant 0 : i32
    return %c0_i32, %c0_i32_0 : i32, i32
  }
  func.func @transform_4(%arg0: i32, %arg1: i32) -> (i32, i32, i32) {
    %c0_i32 = arith.constant 0 : i32
    %c0_i32_0 = arith.constant 0 : i32
    %c0_i32_1 = arith.constant 0 : i32
    return %arg0, %c0_i32, %c0_i32_0 : i32, i32, i32
  }
}

</mosaic_0001>

<llo_original>
// kernel: tpu_custom_call.1
$region0: #{tpu_custom_call.1}
  #allocation0 [shape = 'u32[]', space=smem, size = 0x4, offset = 0x4, fixed_abs, tag = 'smem constant byte address 0x4 - core index']
  #allocation1 [shape = 'u32[144,128]{1,0:T(1,128)}', space=vmem, size = 0x12000, scoped, tag = 'internal scratch']
  #allocation2 [shape = 'f32[8,512]{1,0:T(8,128)}', space=vmem, size = 0x4000, scoped, tag = 'scratch operand']
  %s0 = inlined_call_operand.hbm [shape: f32[4,512], index: 0, kind: input, shape index: {}]
  %s1 = inlined_call_operand.hbm [shape: f32[4,512], index: 1, kind: input, shape index: {}]
  %s2 = inlined_call_operand.vmem [shape: f32[1,64], index: 2, kind: input, shape index: {}]
  %s3 = inlined_call_operand.vmem [shape: f32[1,64], index: 3, kind: input, shape index: {}]
  %s4 = inlined_call_operand.hbm [shape: f32[1,8,128], index: 4, kind: output, shape index: {}]
  %s5 = sld [smem:[#allocation0]]
  $region42: #{tpu_custom_call.1} parent=0
    _
  %s7 = ssub.s32 1, %s5
  %s8 = scalar_select 0, %s7, %s5
  $region1: #{tpu_custom_call.1} parent=0
    #allocation3 [shape = 'u8[16384]{0}', space=vmem, size = 0x4000, scoped, tag = 'input window, operand 0, single buffered']
    #allocation4 [shape = 's32[1]{0}', space=sflag, size = 0x4, scoped, tag = 'scoped memory for tpu_custom_call.1']
    #allocation5 [shape = 's32[1]{0}', space=sflag, size = 0x4, scoped, tag = 'scoped memory for tpu_custom_call.1']
    #allocation6 [shape = 'u8[16384]{0}', space=vmem, size = 0x4000, scoped, tag = 'input window, operand 1, single buffered']
    #allocation7 [shape = 's32[1]{0}', space=sflag, size = 0x4, scoped, tag = 'scoped memory for tpu_custom_call.1']
    #allocation8 [shape = 'u8[4096]{0}', space=vmem, size = 0x1000, scoped, tag = 'output window, operand 0, single buffered']
    %9 = vsyncpa [#allocation4], 0
    %10 = vsyncpa [#allocation7], 0
    %11 = vsyncpa [#allocation5], 0
    // Predicated region
    $region2: #{tpu_custom_call.1} parent=1 // pred_check
      _
    $region3: #{tpu_custom_call.1} parent=1 // pred_check_branch
      %13 = sbr.rel (0) target = $region5
    $region4: #{tpu_custom_call.1} parent=1 // pred_region
      %s14 = sadd.s32 0, 0
      %s15 = smul.u32 2, %s14
      %s16 = ssub.s32 1, %s15
      %s17 = smul.u32 64, %s16
      %s18 = smul.u32 %s17, 4
      %s20 = ssub.s32 512, %s18
      %21 = vsyncadd [#allocation4], %s20
      %p22 = scmp.ne.s32.totalorder 0, %s18
      %s23 = smul.addr %s15, 4
      %s24 = smul.addr %s23, 64
      %s25 = scalar_lea.hbm %s0, %s24
      %s26 = smul.u32 16, %s16
      %s27 = sshll.u32 [#allocation3], 4
      %s28 = int_to_ptr.vmem [resolvable:$true] %s27
      %s29 = sshll.u32 %s26, 4
      %33 = dma.hbm_to_vmem [thread:$0]  (%p22), %s25, %s29, %s28, [#allocation4], 256, 256, 16
    $region5: #{tpu_custom_call.1} parent=1 // pred_fallthru
      _
    // Predicated region
    $region6: #{tpu_custom_call.1} parent=1 // pred_check
      _
    $region7: #{tpu_custom_call.1} parent=1 // pred_check_branch
      %35 = sbr.rel (0) target = $region9
    $region8: #{tpu_custom_call.1} parent=1 // pred_region
      %s36 = sadd.s32 0, 0
      %s37 = smul.u32 2, %s36
      %s38 = ssub.s32 1, %s37
      %s39 = smul.u32 64, %s38
      %s40 = smul.u32 %s39, 4
      %s42 = ssub.s32 512, %s40
      %43 = vsyncadd [#allocation7], %s42
      %p44 = scmp.ne.s32.totalorder 0, %s40
      %s45 = smul.addr %s37, 4
      %s46 = smul.addr %s45, 64
      %s47 = scalar_lea.hbm %s1, %s46
      %s48 = smul.u32 16, %s38
      %s49 = sshll.u32 [#allocation6], 4
      %s50 = int_to_ptr.vmem [resolvable:$true] %s49
      %s51 = sshll.u32 %s48, 4
      %55 = dma.hbm_to_vmem [thread:$0]  (%p44), %s47, %s51, %s50, [#allocation7], 256, 256, 16
    $region9: #{tpu_custom_call.1} parent=1 // pred_fallthru
      _
    // Predicated region
    $region10: #{tpu_custom_call.1} parent=1 // pred_check
      _
    $region11: #{tpu_custom_call.1} parent=1 // pred_check_branch
      %57 = sbr.rel (0) target = $region13
    $region12: #{tpu_custom_call.1} parent=1 // pred_region
      _
    $region13: #{tpu_custom_call.1} parent=1 // pred_fallthru
      _
    // Predicated region
    $region14: #{tpu_custom_call.1} parent=1 // pred_check
      _
    $region15: #{tpu_custom_call.1} parent=1 // pred_check_branch
      %59 = sbr.rel (0) target = $region17
    $region16: #{tpu_custom_call.1} parent=1 // pred_region
      _
    $region17: #{tpu_custom_call.1} parent=1 // pred_fallthru
      _
    // Predicated region
    $region18: #{tpu_custom_call.1} parent=1 // pred_check
      _
    $region19: #{tpu_custom_call.1} parent=1 // pred_check_branch
      %61 = sbr.rel (0) target = $region21
    $region20: #{tpu_custom_call.1} parent=1 // pred_region
      %62 = dma.done [#allocation4], 512
    $region21: #{tpu_custom_call.1} parent=1 // pred_fallthru
      _
    // Predicated region
    $region22: #{tpu_custom_call.1} parent=1 // pred_check
      _
    $region23: #{tpu_custom_call.1} parent=1 // pred_check_branch
      %64 = sbr.rel (0) target = $region25
    $region24: #{tpu_custom_call.1} parent=1 // pred_region
      %65 = dma.done [#allocation7], 512
    $region25: #{tpu_custom_call.1} parent=1 // pred_fallthru
      _
    %s66 = sadd.s32 0, 0
    %s67 = smul.u32 2, %s66
    %s68 = ssub.s32 1, %s67
    %s69 = smul.u32 64, %s68
    %s70 = smul.u32 %s69, 4
    %s71 = sadd.s32 0, 0
    %s72 = smul.u32 2, %s71
    %s73 = ssub.s32 1, %s72
    %s74 = smul.u32 64, %s73
    %s75 = smul.u32 %s74, 4
    %p76 = scmp.eq.s32.totalorder 0, 0
    // Predicated region
    $region26: #{tpu_custom_call.1} parent=1 // pred_check
      %p77 = pneg %p76
    $region27: #{tpu_custom_call.1} parent=1 // pred_check_branch
      %79 = sbr.rel (%p77) target = $region29
    $region28: #{tpu_custom_call.1} parent=1 // pred_region
      %80 = vst [vmem:[#allocation2] sm:$0xff] 0.0
      %81 = vst [vmem:[#allocation2 + $0x8] sm:$0xff] 0.0
      %82 = vst [vmem:[#allocation2 + $0x10] sm:$0xff] 0.0
      %83 = vst [vmem:[#allocation2 + $0x18] sm:$0xff] 0.0
    $region29: #{tpu_custom_call.1} parent=1 // pred_fallthru
      _
    %v84 = vld [vmem:[#allocation3] sm:$0xff]
    %v85 = vld [vmem:[#allocation3 + $0x8] sm:$0xff]
    %v86 = vld [vmem:[#allocation3 + $0x10] sm:$0xff]
    %v87 = vld [vmem:[#allocation3 + $0x18] sm:$0xff]
    %v88 = vld [vmem:[#allocation6] sm:$0xff]
    %v89 = vld [vmem:[#allocation6 + $0x8] sm:$0xff]
    %v90 = vld [vmem:[#allocation6 + $0x10] sm:$0xff]
    %v91 = vld [vmem:[#allocation6 + $0x18] sm:$0xff]
    %v92 = vlog2.pop %v84
    %v93 = vmul.f32 %v92, 0.6931472
    %v94 = vlog2.pop %v85
    %v95 = vmul.f32 %v94, 0.6931472
    %v96 = vlog2.pop %v86
    %v97 = vmul.f32 %v96, 0.6931472
    %v98 = vlog2.pop %v87
    %v99 = vmul.f32 %v98, 0.6931472
    %v100 = vmax.f32 %v93, -100.0
    %v101 = vmax.f32 %v95, -100.0
    %v102 = vmax.f32 %v97, -100.0
    %v103 = vmax.f32 %v99, -100.0
    %v104 = vsub.f32 1.0, %v84
    %v105 = vsub.f32 1.0, %v85
    %v106 = vsub.f32 1.0, %v86
    %v107 = vsub.f32 1.0, %v87
    %v108 = vlog2.pop %v104
    %v109 = vmul.f32 %v108, 0.6931472
    %v110 = vlog2.pop %v105
    %v111 = vmul.f32 %v110, 0.6931472
    %v112 = vlog2.pop %v106
    %v113 = vmul.f32 %v112, 0.6931472
    %v114 = vlog2.pop %v107
    %v115 = vmul.f32 %v114, 0.6931472
    %v116 = vmax.f32 %v109, -100.0
    %v117 = vmax.f32 %v111, -100.0
    %v118 = vmax.f32 %v113, -100.0
    %v119 = vmax.f32 %v115, -100.0
    %v120 = vsub.f32 %v100, %v116
    %v121 = vsub.f32 %v101, %v117
    %v122 = vsub.f32 %v102, %v118
    %v123 = vsub.f32 %v103, %v119
    %v124 = vmul.f32 %v88, %v120
    %v125 = vmul.f32 %v89, %v121
    %v126 = vmul.f32 %v90, %v122
    %v127 = vmul.f32 %v91, %v123
    %v128 = vadd.f32 %v116, %v124
    %v129 = vadd.f32 %v117, %v125
    %v130 = vadd.f32 %v118, %v126
    %v131 = vadd.f32 %v119, %v127
    %s132 = sadd.s32 0, 0
    %v133 = vlaneseq
    %v134 = vshrl.u32 %v133, 7
    %s135 = smul.u32 %s132, 8
    %s136 = ssub.s32 4, %s135
    %v137 = vstv %s136
    %vm138 = vcmp.lt.s32.totalorder %v134, %v137
    %v143 = vcombine.low %v128, %v130
    %v144 = vcombine.high %v128, %v130
    %v145 = vcombine.low %v129, %v131
    %v146 = vcombine.high %v129, %v131
    %v151 = vsel %vm138, %v143, 0.0
    %v152 = vsel %vm138, %v144, 0.0
    %v153 = vsel %vm138, %v145, 0.0
    %v154 = vsel %vm138, %v146, 0.0
    %v155 = vld [vmem:[#allocation2] sm:$0xff]
    %v156 = vld [vmem:[#allocation2 + $0x8] sm:$0xff]
    %v157 = vld [vmem:[#allocation2 + $0x10] sm:$0xff]
    %v158 = vld [vmem:[#allocation2 + $0x18] sm:$0xff]
    %v159 = vadd.f32 %v151, 0.0
    %v160 = vadd.f32 %v152, 0.0
    %v161 = vadd.f32 %v153, 0.0
    %v162 = vadd.f32 %v154, 0.0
    %v163 = vadd.f32 %v155, %v159
    %v164 = vadd.f32 %v156, %v160
    %v165 = vadd.f32 %v157, %v161
    %v166 = vadd.f32 %v158, %v162
    %167 = vst [vmem:[#allocation2] sm:$0xff] %v163
    %168 = vst [vmem:[#allocation2 + $0x8] sm:$0xff] %v164
    %169 = vst [vmem:[#allocation2 + $0x10] sm:$0xff] %v165
    %170 = vst [vmem:[#allocation2 + $0x18] sm:$0xff] %v166
    // Predicated region
    $region30: #{tpu_custom_call.1} parent=1 // pred_check
      %p171 = pneg %p76
    $region31: #{tpu_custom_call.1} parent=1 // pred_check_branch
      %173 = sbr.rel (%p171) target = $region33
    $region32: #{tpu_custom_call.1} parent=1 // pred_region
      %v174 = vld [vmem:[#allocation2] sm:$0xff]
      %v175 = vld [vmem:[#allocation2 + $0x8] sm:$0xff]
      %v176 = vld [vmem:[#allocation2 + $0x10] sm:$0xff]
      %v177 = vld [vmem:[#allocation2 + $0x18] sm:$0xff]
      %v178 = vadd.f32 %v174, %v175
      %v179 = vadd.f32 %v178, %v176
      %v180 = vadd.f32 %v179, %v177
      %181 = vadd.xlane.f32.xlu0 %v180
      %v182 = vpop.xlane.xlu0 %181
      %v183 = vrot.slane %v182, 4
      %v184 = vadd.f32 %v182, %v183
      %v185 = vrot.slane %v184, 2
      %v186 = vadd.f32 %v184, %v185
      %v187 = vrot.slane %v186, 1
      %v188 = vadd.f32 %v186, %v187
      %s189 = vtos %v188
      %s190 = ssub.f32 0.0, %s189
      %v191 = vld [vmem:[%s2] sm:$0x1]
      %v192 = vld [vmem:[%s3] sm:$0x1]
      %v193 = vsub.f32 -1.0, %v192
      %v194 = vmul.f32 %v191, %v191
      %v195 = vadd.f32 %v193, %v194
      %v196 = vmul.f32 %v192, 1.442695
      %v197 = vpow.pop %v196
      %v198 = vadd.f32 %v195, %v197
      %vm199 = vcmask 516096
      %v200 = vsel %vm199, %v198, 0.0
      %201 = vadd.xlane.f32.xlu0 %v200
      %v202 = vpop.xlane.xlu0 %201
      %v203 = vrot.slane %v202, 4
      %v204 = vadd.f32 %v202, %v203
      %v205 = vrot.slane %v204, 2
      %v206 = vadd.f32 %v204, %v205
      %v207 = vrot.slane %v206, 1
      %v208 = vadd.f32 %v206, %v207
      %s209 = vtos %v208
      %s210 = smul.f32 %s209, 0.5
      %p211 = scmp.eq.s32.totalorder 0, 0
      %s212 = scalar_select %p211, %s210, 0.0
      %s213 = sadd.f32 %s190, %s212
      %v214 = vstv %s213
      %215 = vst [vmem:[#allocation8] sm:$0xff] %v214
    $region33: #{tpu_custom_call.1} parent=1 // pred_fallthru
      _
    // Predicated region
    $region34: #{tpu_custom_call.1} parent=1 // pred_check
      _
    $region35: #{tpu_custom_call.1} parent=1 // pred_check_branch
      %217 = sbr.rel (0) target = $region37
    $region36: #{tpu_custom_call.1} parent=1 // pred_region
      %s219 = ssub.s32 128, 128
      %220 = vsyncadd [#allocation5], %s219
      %s222 = sshll.u32 [#allocation8], 4
      %s223 = int_to_ptr.vmem [resolvable:$true] %s222
      %225 = dma.vmem_to_hbm [thread:$0]  %s223, 128, %s4, [#allocation5]
    $region37: #{tpu_custom_call.1} parent=1 // pred_fallthru
      _
    // Predicated region
    $region38: #{tpu_custom_call.1} parent=1 // pred_check
      _
    $region39: #{tpu_custom_call.1} parent=1 // pred_check_branch
      %227 = sbr.rel (0) target = $region41
    $region40: #{tpu_custom_call.1} parent=1 // pred_region
      %228 = dma.done [#allocation5], 128
    $region41: #{tpu_custom_call.1} parent=1 // pred_fallthru
      _
    %229 = vsyncpa [#allocation4], 1
    %230 = vsyncpa [#allocation7], 1
    %231 = vsyncpa [#allocation5], 1

</llo_original>
